<compile_context>
chip_gen: v6e
topology: v6e:2x2x1
jax: 0.10.0
libtpu: 0.0.40
codegen_flags: <defaults>
</compile_context>

<pallas_src>
import math
from typing import NamedTuple, Optional

import jax
import jax.numpy as jnp
from jax.experimental import pallas as pl
from jax.experimental.pallas import tpu as pltpu


def _round_up(x, m):
    return ((x + m - 1) // m) * m


# ---------------------------------------------------------------------------
# Generation-aware VMEM budget (cached)
# ---------------------------------------------------------------------------
_VMEM_BUDGET_CACHE = None


def _default_vmem_budget():
    """~78% of physical VMEM: leaves headroom for Mosaic internal scratch and the
    double-buffered x/out tiles the coarse estimate under-counts."""
    global _VMEM_BUDGET_CACHE
    if _VMEM_BUDGET_CACHE is not None:
        return _VMEM_BUDGET_CACHE
    cap = None
    try:
        info = pltpu.get_tpu_info()
        for name in ("vmem_capacity_bytes", "vmem_size_bytes", "vmem_bytes"):
            v = getattr(info, name, None)
            if v:
                cap = int(v)
                break
    except Exception:
        cap = None
    if not cap:
        cap = 64 * 1024 * 1024  # conservative fallback == v7x per-TC VMEM
    _VMEM_BUDGET_CACHE = int(cap * 0.78)
    return _VMEM_BUDGET_CACHE


# ---------------------------------------------------------------------------
# Parameter preparation (pad + cast ONCE, outside the hot path)
# ---------------------------------------------------------------------------
class PreparedFFN(NamedTuple):
    n_layers: int
    dims: tuple       # true feature dims, length n_layers + 1
    pdims: tuple      # lane-padded feature dims
    weights: tuple    # padded, compute_dtype, shape (pdims[l], pdims[l+1])
    biases: tuple     # padded, float32, shape (1, pdims[l+1])
    alpha: Optional[jax.Array]   # (1, 1) float32 PReLU slope, None if n_layers == 1
    compute_dtype: jnp.dtype


def _pad_dim(d, compute_dtype):
    p128 = _round_up(d, 128)
    if jnp.dtype(compute_dtype).itemsize < 4:
        # bf16/fp8: v6e/v7x MXU tile is 256 wide; pad to 256 if extra zeros <= 12.5%
        p256 = _round_up(d, 256)
        if p256 * 8 <= p128 * 9:
            return p256
    return p128


def prepare_params(params, alpha, n_layers, compute_dtype=jnp.float32):
    """Pad feature dims to MXU-friendly lane multiples and cast once.
    params: list of (w_t, b); w_t: (fin, fout) pre-transposed, b: (fout,) or (1, fout).
    """
    assert len(params) == n_layers
    compute_dtype = jnp.dtype(compute_dtype)
    dims = [params[0][0].shape[0]] + [w.shape[1] for (w, _) in params]
    pdims = [_pad_dim(d, compute_dtype) for d in dims]

    weights, biases = [], []
    for l, (w_t, b) in enumerate(params):
        dw_in, dw_out = pdims[l] - dims[l], pdims[l + 1] - dims[l + 1]
        w_p = jnp.pad(w_t, ((0, dw_in), (0, dw_out))) if (dw_in or dw_out) else w_t
        weights.append(w_p.astype(compute_dtype))
        b2 = jnp.asarray(b).reshape(1, -1)
        b_p = jnp.pad(b2, ((0, 0), (0, dw_out))) if dw_out else b2
        biases.append(b_p.astype(jnp.float32))

    alpha_p = None
    if n_layers > 1:
        alpha_p = jnp.asarray(alpha, jnp.float32).reshape(1, 1)

    return PreparedFFN(n_layers, tuple(dims), tuple(pdims), tuple(weights),
                       tuple(biases), alpha_p, compute_dtype)


# ---------------------------------------------------------------------------
# Fused kernel: the whole MLP for one row tile per grid step
# ---------------------------------------------------------------------------
def _make_fused_kernel(n_layers, apply_prelu, compute_dtype):
    has_prelu = any(apply_prelu)

    def kernel(*refs):
        x_ref = refs[0]
        wb = refs[1:1 + 2 * n_layers]
        pos = 1 + 2 * n_layers
        alpha_ref = refs[pos] if has_prelu else None
        o_ref = refs[pos + 1] if has_prelu else refs[pos]

        h = x_ref[...]                              # already compute_dtype (narrow)
        for l in range(n_layers):
            w_ref, b_ref = wb[2 * l], wb[2 * l + 1]
            y = jnp.dot(h, w_ref[...], preferred_element_type=jnp.float32)
            y = y + b_ref[...]                      # bias add in f32
            if apply_prelu[l]:
                a = alpha_ref[0, 0]                 # scalar slope from SMEM
                y = jnp.where(y > 0, y, a * y)      # PReLU in f32 (v5e VPU has no bf16)
                # eval-mode dropout == identity
            if l + 1 < n_layers:
                h = y.astype(compute_dtype)         # carry narrow activations
            else:
                o_ref[...] = y.astype(o_ref.dtype)

    return kernel


def _fused_forward(x, prep, out_dtype, tm, budget):
    L, dims, pdims, cd = prep.n_layers, prep.dims, prep.pdims, prep.compute_dtype
    cd_size = jnp.dtype(cd).itemsize
    out_size = jnp.dtype(out_dtype).itemsize
    n = x.shape[0]
    n_p = _round_up(n, tm)

    pad_rows, pad_cols = n_p - n, pdims[0] - dims[0]
    x_p = jnp.pad(x, ((0, pad_rows), (0, pad_cols))) if (pad_rows or pad_cols) else x
    if x_p.dtype != cd:
        x_p = x_p.astype(cd)

    args = [x_p]
    for l in range(L):
        args.append(prep.weights[l])
        args.append(prep.biases[l])
    has_prelu = L > 1
    if has_prelu:
        args.append(prep.alpha)

    kernel = _make_fused_kernel(L, tuple(l < L - 1 for l in range(L)), cd)

    flops = sum(2 * n_p * pdims[l] * pdims[l + 1] for l in range(L))
    bytes_accessed = int(n_p * pdims[0] * cd_size + n_p * pdims[-1] * out_size
                         + sum(pdims[l] * pdims[l + 1] * cd_size + pdims[l + 1] * 4
                               for l in range(L)))
    vmem_limit = int(max(budget, 32 * 1024 * 1024))
    vmem_limit = min(vmem_limit, _default_vmem_budget())
    vmem_limit = max(vmem_limit, 32 * 1024 * 1024)

    def call(single_buffer_weights):
        in_specs = [pl.BlockSpec((tm, pdims[0]), lambda i: (i, 0))]
        for l in range(L):
            kw = ({"pipeline_mode": pl.Buffered(1)} if single_buffer_weights else {})
            in_specs.append(pl.BlockSpec((pdims[l], pdims[l + 1]),
                                         lambda i: (0, 0), **kw))
            in_specs.append(pl.BlockSpec((1, pdims[l + 1]), lambda i: (0, 0), **kw))
        if has_prelu:
            in_specs.append(pl.BlockSpec(memory_space=pltpu.MemorySpace.SMEM))
        return pl.pallas_call(
            kernel,
            out_shape=jax.ShapeDtypeStruct((n_p, pdims[-1]), out_dtype),
            grid=(n_p // tm,),
            in_specs=in_specs,
            out_specs=pl.BlockSpec((tm, pdims[-1]), lambda i: (i, 0)),
            compiler_params=pltpu.CompilerParams(
                dimension_semantics=("parallel",),      # v7x: row tiles split across TCs
                vmem_limit_bytes=vmem_limit),
            cost_estimate=pl.CostEstimate(flops=int(flops), transcendentals=0,
                                          bytes_accessed=bytes_accessed),
        )(*args)

    try:
        out_p = call(True)        # single-buffered resident weights (Buffered(1))
    except Exception:
        out_p = call(False)       # fallback: default double-buffering

    if out_p.shape != (n, dims[-1]):
        out_p = out_p[:n, :dims[-1]]
    return out_p


# ---------------------------------------------------------------------------
# Fallback: per-layer (M, N, K)-tiled matmul + bias (+ PReLU), streaming weights
# ---------------------------------------------------------------------------
def _make_streamed_layer_kernel(apply_prelu):
    def kernel(*refs):
        if apply_prelu:
            x_ref, w_ref, b_ref, alpha_ref, o_ref, acc_ref = refs
        else:
            x_ref, w_ref, b_ref, o_ref, acc_ref = refs
        k = pl.program_id(2)

        @pl.when(k == 0)
        def _():
            acc_ref[...] = jnp.zeros_like(acc_ref)

        acc_ref[...] += jnp.dot(x_ref[...], w_ref[...],
                                preferred_element_type=jnp.float32)

        @pl.when(k == pl.num_programs(2) - 1)
        def _():
            y = acc_ref[...] + b_ref[...]
            if apply_prelu:
                a = alpha_ref[0, 0]
                y = jnp.where(y > 0, y, a * y)
            o_ref[...] = y.astype(o_ref.dtype)

    return kernel


def _largest_divisor_tile(dim, candidates):
    for c in candidates:
        if dim % c == 0:
            return c
    return 128


def _streamed_linear(x_p, w_p, b_p, alpha, apply_prelu, out_dtype, budget):
    M, K = x_p.shape
    Kw, N = w_p.shape
    assert K == Kw
    cd_size = x_p.dtype.itemsize
    out_size = jnp.dtype(out_dtype).itemsize

    tk = _largest_divisor_tile(K, (1024, 512, 256, 128))
    tn = _largest_divisor_tile(N, (1024, 512, 256, 128))
    tm = min(512, _round_up(M, 8))
    tm = max(8, _round_up(tm, 8))

    def est(tm_, tk_, tn_):
        return (2 * tm_ * tk_ * cd_size + 2 * tk_ * tn_ * cd_size + 2 * tn_ * 4
                + 2 * tm_ * tn_ * out_size + tm_ * tn_ * 4)

    while est(tm, tk, tn) > budget and tk > 128 and K % (tk // 2) == 0:
        tk //= 2
    while est(tm, tk, tn) > budget and tn > 128 and N % (tn // 2) == 0:
        tn //= 2
    while est(tm, tk, tn) > budget and tm > 8:
        tm = max(8, _round_up(tm // 2, 8))

    M_p = _round_up(M, tm)
    if M_p != M:
        x_p = jnp.pad(x_p, ((0, M_p - M), (0, 0)))

    args = [x_p, w_p, b_p]
    in_specs = [
        pl.BlockSpec((tm, tk), lambda i, j, k: (i, k)),
        pl.BlockSpec((tk, tn), lambda i, j, k: (k, j)),
        pl.BlockSpec((1, tn), lambda i, j, k: (0, j)),
    ]
    if apply_prelu:
        args.append(alpha)
        in_specs.append(pl.BlockSpec(memory_space=pltpu.MemorySpace.SMEM))

    vmem_limit = max(min(int(budget), _default_vmem_budget()), 32 * 1024 * 1024)

    return pl.pallas_call(
        _make_streamed_layer_kernel(apply_prelu),
        out_shape=jax.ShapeDtypeStruct((M_p, N), out_dtype),
        grid=(M_p // tm, N // tn, K // tk),
        in_specs=in_specs,
        out_specs=pl.BlockSpec((tm, tn), lambda i, j, k: (i, j)),
        scratch_shapes=[pltpu.VMEM((tm, tn), jnp.float32)],
        compiler_params=pltpu.CompilerParams(
            dimension_semantics=("parallel", "parallel", "arbitrary"),
            vmem_limit_bytes=vmem_limit),
        cost_estimate=pl.CostEstimate(
            flops=int(2 * M_p * K * N), transcendentals=0,
            bytes_accessed=int(M_p * K * cd_size + K * N * cd_size + M_p * N * out_size)),
    )(*args)


def _streamed_forward(x, prep, out_dtype, budget):
    L, dims, pdims, cd = prep.n_layers, prep.dims, prep.pdims, prep.compute_dtype
    n = x.shape[0]
    h = x
    if h.shape[1] != pdims[0]:
        h = jnp.pad(h, ((0, 0), (0, pdims[0] - dims[0])))
    if h.dtype != cd:
        h = h.astype(cd)
    # TODO(synk): group consecutive small layers into one fused call so activations
    # stay on-chip within a group; currently every layer round-trips HBM here.
    for l in range(L):
        apply_prelu = l < L - 1
        o_dt = cd if apply_prelu else out_dtype
        h = _streamed_linear(h, prep.weights[l], prep.biases[l],
                             prep.alpha, apply_prelu, o_dt, budget)
    if h.shape != (n, dims[-1]):
        h = h[:n, :dims[-1]]
    return h


# ---------------------------------------------------------------------------
# Top-level forward
# ---------------------------------------------------------------------------
def feedforward_net(x, prep: PreparedFFN, *, tm=None, vmem_budget_bytes=None):
    """Fused SIGN FeedForwardNet forward (eval mode).

    x:    (N, in_feats)
    prep: output of prepare_params(...) — padded/cast once and cached by the caller.
    """
    L, dims, pdims, cd = prep.n_layers, prep.dims, prep.pdims, prep.compute_dtype
    assert x.shape[1] == dims[0]
    out_dtype = x.dtype
    n = x.shape[0]

    budget = int(vmem_budget_bytes) if vmem_budget_bytes is not None else _default_vmem_budget()
    cd_size = jnp.dtype(cd).itemsize
    out_size = jnp.dtype(out_dtype).itemsize

    # Resident (single-buffered) weights + biases
    weight_bytes = sum(pdims[l] * pdims[l + 1] * cd_size + pdims[l + 1] * 4
                       for l in range(L))

    def fused_est(tm_):
        est = 2 * tm_ * pdims[0] * cd_size           # x tile, double-buffered
        est += 2 * tm_ * pdims[-1] * out_size        # out tile, double-buffered
        est += weight_bytes                          # weights, Buffered(1)
        est += 3 * tm_ * max(pdims) * 4              # live f32/cast intermediates
        return est

    if tm is None:
        tm = min(1024, _round_up(n, 8))
    tm = max(8, _round_up(tm, 8))
    while tm > 8 and fused_est(tm) > budget:
        tm = max(8, _round_up(tm // 2, 8))

    if fused_est(tm) <= budget:
        return _fused_forward(x, prep, out_dtype, tm, budget)
    # Resident weights alone exceed the VMEM budget (e.g. big hidden on v7x's 64 MiB):
    # stream weight tiles per layer instead of failing.
    return _streamed_forward(x, prep, out_dtype, budget)


# ---------------------------------------------------------------------------
# Parameter init (deterministic, mirrors reset_parameters)
# ---------------------------------------------------------------------------
def init_params(key, in_feats, hidden, out_feats, n_layers, dtype=jnp.float32):
    gain = math.sqrt(2.0)  # nn.init.calculate_gain('relu')
    if n_layers == 1:
        shapes = [(in_feats, out_feats)]
    else:
        shapes = [(in_feats, hidden)]
        shapes += [(hidden, hidden)] * (n_layers - 2)
        shapes += [(hidden, out_feats)]

    params = []
    for (fin, fout) in shapes:
        key, sub = jax.random.split(key)
        bound = gain * math.sqrt(6.0 / (fin + fout))   # xavier_uniform_
        # PyTorch weight shape is (fout, fin); store pre-transposed (fin, fout)
        w_t = jax.random.uniform(sub, (fin, fout), dtype, minval=-bound, maxval=bound)
        b = jnp.zeros((1, fout), dtype)
        params.append((w_t, b))

    alpha = jnp.full((1, 1), 0.25, dtype) if n_layers > 1 else None  # nn.PReLU default
    return params, alpha


# ---------------------------------------------------------------------------
# Pure-JAX reference
# ---------------------------------------------------------------------------
def feedforward_net_ref(x, params, alpha, n_layers):
    for layer_id, (w_t, b) in enumerate(params):
        x = x @ w_t + b
        if layer_id < n_layers - 1:
            a = alpha[0, 0]
            x = jnp.where(x > 0, x, a * x)
    return x


if __name__ == "__main__":
    key = jax.random.PRNGKey(0)

    # small shapes consistent with the module
    N, in_feats, hidden, out_feats, n_layers, dropout = 8, 16, 32, 8, 3, 0.5

    k_x, k_p, k_x2 = jax.random.split(key, 3)
    x = jax.random.normal(k_x, (N, in_feats), jnp.float32)
    params, alpha = init_params(k_p, in_feats, hidden, out_feats, n_layers)
    ref = feedforward_net_ref(x, params, alpha, n_layers)

    # 1) f32 compute path (prepare once, reuse across calls)
    prep_f32 = prepare_params(params, alpha, n_layers, compute_dtype=jnp.float32)
    out = jax.block_until_ready(feedforward_net(x, prep_f32))
    assert out.shape == (N, out_feats)
    assert jnp.allclose(out, ref, atol=1e-5, rtol=1e-5), "f32 mismatch vs reference"

    # 2) bf16 matmul operands + bf16 inter-layer activations (recommended on v6e/v7x),
    #    f32 accumulation — loose tolerance
    prep_bf16 = prepare_params(params, alpha, n_layers, compute_dtype=jnp.bfloat16)
    out_bf16 = jax.block_until_ready(feedforward_net(x, prep_bf16))
    assert out_bf16.shape == (N, out_feats)
    assert jnp.allclose(out_bf16, ref, atol=0.15, rtol=0.15), "bf16 mismatch vs reference"

    # 3) multi-tile grid path (N not a multiple of the tile -> row padding + slicing)
    N2 = 200
    x2 = jax.random.normal(k_x2, (N2, in_feats), jnp.float32)
    ref2 = feedforward_net_ref(x2, params, alpha, n_layers)
    out2 = jax.block_until_ready(feedforward_net(x2, prep_f32, tm=64))
    assert out2.shape == (N2, out_feats)
    assert jnp.allclose(out2, ref2, atol=1e-5, rtol=1e-5), "tiled mismatch vs reference"

    # 4) weight-streaming fallback (force a tiny decision budget so the resident-weight
    #    fused path is rejected and the per-layer K/N-streamed kernels run)
    out3 = jax.block_until_ready(
        feedforward_net(x, prep_f32, vmem_budget_bytes=192 * 1024))
    assert out3.shape == (N, out_feats)
    assert jnp.allclose(out3, ref, atol=1e-5, rtol=1e-5), "streamed mismatch vs reference"

    print("KERNEL_OK")
</pallas_src>

<mosaic_0001>
module attributes {stable_mosaic.version = 11 : i64} {
  func.func @kernel(%arg0: i32, %arg1: memref<8x128xf32, #tpu.memory_space<vmem>>, %arg2: memref<128x128xf32, #tpu.memory_space<vmem>>, %arg3: memref<1x128xf32, #tpu.memory_space<vmem>>, %arg4: memref<128x128xf32, #tpu.memory_space<vmem>>, %arg5: memref<1x128xf32, #tpu.memory_space<vmem>>, %arg6: memref<128x128xf32, #tpu.memory_space<vmem>>, %arg7: memref<1x128xf32, #tpu.memory_space<vmem>>, %arg8: memref<1x1xf32, #tpu.memory_space<smem>>, %arg9: memref<8x128xf32, #tpu.memory_space<vmem>>) attributes {dimension_semantics = [#tpu.dimension_semantics<parallel>], iteration_bounds = array<i64: 1>, scalar_prefetch = 0 : i64, scratch_operands = 0 : i64, tpu.core_type = #tpu.core_type<tc>, window_params = [{transform_indices = @transform_0, window_bounds = array<i64: 8, 128>}, {pipeline_mode = #tpu.pipeline_mode<synchronous>, transform_indices = @transform_1, window_bounds = array<i64: 128, 128>}, {pipeline_mode = #tpu.pipeline_mode<synchronous>, transform_indices = @transform_2, window_bounds = array<i64: 1, 128>}, {pipeline_mode = #tpu.pipeline_mode<synchronous>, transform_indices = @transform_3, window_bounds = array<i64: 128, 128>}, {pipeline_mode = #tpu.pipeline_mode<synchronous>, transform_indices = @transform_4, window_bounds = array<i64: 1, 128>}, {pipeline_mode = #tpu.pipeline_mode<synchronous>, transform_indices = @transform_5, window_bounds = array<i64: 128, 128>}, {pipeline_mode = #tpu.pipeline_mode<synchronous>, transform_indices = @transform_6, window_bounds = array<i64: 1, 128>}, {transform_indices = @transform_7, window_bounds = array<i64: 1, 1>}, {transform_indices = @transform_8, window_bounds = array<i64: 8, 128>}]} {
    %c0 = arith.constant 0 : index
    %c0_0 = arith.constant 0 : index
    %0 = vector.load %arg1[%c0, %c0_0] : memref<8x128xf32, #tpu.memory_space<vmem>>, vector<8x128xf32>
    %c0_1 = arith.constant 0 : index
    %c0_2 = arith.constant 0 : index
    %1 = vector.load %arg2[%c0_1, %c0_2] : memref<128x128xf32, #tpu.memory_space<vmem>>, vector<128x128xf32>
    %cst = arith.constant dense<0.000000e+00> : vector<8x128xf32>
    %2 = tpu.matmul %0, %1, %cst {dimension_numbers = #tpu.dot_dimension_numbers<[1], [0], [0], [1], [0, 0, 1, 1], [], []>} : vector<8x128xf32>, vector<128x128xf32>, vector<8x128xf32> -> vector<8x128xf32>
    %c0_3 = arith.constant 0 : index
    %c0_4 = arith.constant 0 : index
    %3 = vector.load %arg3[%c0_3, %c0_4] : memref<1x128xf32, #tpu.memory_space<vmem>>, vector<1x128xf32>
    %4 = vector.broadcast %3 : vector<1x128xf32> to vector<8x128xf32>
    %5 = arith.addf %2, %4 : vector<8x128xf32>
    %c0_5 = arith.constant 0 : index
    %c0_6 = arith.constant 0 : index
    %6 = memref.load %arg8[%c0_5, %c0_6] : memref<1x1xf32, #tpu.memory_space<smem>>
    %cst_7 = arith.constant 0.000000e+00 : f32
    %7 = vector.broadcast %cst_7 : f32 to vector<8x128xf32>
    %8 = arith.cmpf ogt, %5, %7 : vector<8x128xf32>
    %9 = vector.broadcast %6 : f32 to vector<8x128xf32>
    %10 = arith.mulf %9, %5 : vector<8x128xf32>
    %11 = arith.select %8, %5, %10 : vector<8x128xi1>, vector<8x128xf32>
    %c0_8 = arith.constant 0 : index
    %c0_9 = arith.constant 0 : index
    %12 = vector.load %arg4[%c0_8, %c0_9] : memref<128x128xf32, #tpu.memory_space<vmem>>, vector<128x128xf32>
    %cst_10 = arith.constant dense<0.000000e+00> : vector<8x128xf32>
    %13 = tpu.matmul %11, %12, %cst_10 {dimension_numbers = #tpu.dot_dimension_numbers<[1], [0], [0], [1], [0, 0, 1, 1], [], []>} : vector<8x128xf32>, vector<128x128xf32>, vector<8x128xf32> -> vector<8x128xf32>
    %c0_11 = arith.constant 0 : index
    %c0_12 = arith.constant 0 : index
    %14 = vector.load %arg5[%c0_11, %c0_12] : memref<1x128xf32, #tpu.memory_space<vmem>>, vector<1x128xf32>
    %15 = vector.broadcast %14 : vector<1x128xf32> to vector<8x128xf32>
    %16 = arith.addf %13, %15 : vector<8x128xf32>
    %c0_13 = arith.constant 0 : index
    %c0_14 = arith.constant 0 : index
    %17 = memref.load %arg8[%c0_13, %c0_14] : memref<1x1xf32, #tpu.memory_space<smem>>
    %cst_15 = arith.constant 0.000000e+00 : f32
    %18 = vector.broadcast %cst_15 : f32 to vector<8x128xf32>
    %19 = arith.cmpf ogt, %16, %18 : vector<8x128xf32>
    %20 = vector.broadcast %17 : f32 to vector<8x128xf32>
    %21 = arith.mulf %20, %16 : vector<8x128xf32>
    %22 = arith.select %19, %16, %21 : vector<8x128xi1>, vector<8x128xf32>
    %c0_16 = arith.constant 0 : index
    %c0_17 = arith.constant 0 : index
    %23 = vector.load %arg6[%c0_16, %c0_17] : memref<128x128xf32, #tpu.memory_space<vmem>>, vector<128x128xf32>
    %cst_18 = arith.constant dense<0.000000e+00> : vector<8x128xf32>
    %24 = tpu.matmul %22, %23, %cst_18 {dimension_numbers = #tpu.dot_dimension_numbers<[1], [0], [0], [1], [0, 0, 1, 1], [], []>} : vector<8x128xf32>, vector<128x128xf32>, vector<8x128xf32> -> vector<8x128xf32>
    %c0_19 = arith.constant 0 : index
    %c0_20 = arith.constant 0 : index
    %25 = vector.load %arg7[%c0_19, %c0_20] : memref<1x128xf32, #tpu.memory_space<vmem>>, vector<1x128xf32>
    %26 = vector.broadcast %25 : vector<1x128xf32> to vector<8x128xf32>
    %27 = arith.addf %24, %26 : vector<8x128xf32>
    %c0_21 = arith.constant 0 : index
    %c0_22 = arith.constant 0 : index
    %28 = vector.load %arg9[%c0_21, %c0_22] : memref<8x128xf32, #tpu.memory_space<vmem>>, vector<8x128xf32>
    tpu.vector_store %arg9[%c0_21, %c0_22], %27 {strides = array<i32>} : memref<8x128xf32, #tpu.memory_space<vmem>>, vector<8x128xf32>,
    return
  }
  func.func @transform_0(%arg0: i32) -> (i32, i32) {
    %c0_i32 = arith.constant 0 : i32
    %c0_i32_0 = arith.constant 0 : i32
    return %arg0, %c0_i32 : i32, i32
  }
  func.func @transform_1(%arg0: i32) -> (i32, i32) {
    %c0_i32 = arith.constant 0 : i32
    %c0_i32_0 = arith.constant 0 : i32
    %c0_i32_1 = arith.constant 0 : i32
    return %c0_i32, %c0_i32_0 : i32, i32
  }
  func.func @transform_2(%arg0: i32) -> (i32, i32) {
    %c0_i32 = arith.constant 0 : i32
    %c0_i32_0 = arith.constant 0 : i32
    %c0_i32_1 = arith.constant 0 : i32
    return %c0_i32, %c0_i32_0 : i32, i32
  }
  func.func @transform_3(%arg0: i32) -> (i32, i32) {
    %c0_i32 = arith.constant 0 : i32
    %c0_i32_0 = arith.constant 0 : i32
    %c0_i32_1 = arith.constant 0 : i32
    return %c0_i32, %c0_i32_0 : i32, i32
  }
  func.func @transform_4(%arg0: i32) -> (i32, i32) {
    %c0_i32 = arith.constant 0 : i32
    %c0_i32_0 = arith.constant 0 : i32
    %c0_i32_1 = arith.constant 0 : i32
    return %c0_i32, %c0_i32_0 : i32, i32
  }
  func.func @transform_5(%arg0: i32) -> (i32, i32) {
    %c0_i32 = arith.constant 0 : i32
    %c0_i32_0 = arith.constant 0 : i32
    %c0_i32_1 = arith.constant 0 : i32
    return %c0_i32, %c0_i32_0 : i32, i32
  }
  func.func @transform_6(%arg0: i32) -> (i32, i32) {
    %c0_i32 = arith.constant 0 : i32
    %c0_i32_0 = arith.constant 0 : i32
    %c0_i32_1 = arith.constant 0 : i32
    return %c0_i32, %c0_i32_0 : i32, i32
  }
  func.func @transform_7(%arg0: i32) -> (i32, i32) {
    %c0_i32 = arith.constant 0 : i32
    %c0_i32_0 = arith.constant 0 : i32
    %c0_i32_1 = arith.constant 0 : i32
    return %c0_i32, %c0_i32_0 : i32, i32
  }
  func.func @transform_8(%arg0: i32) -> (i32, i32) {
    %c0_i32 = arith.constant 0 : i32
    %c0_i32_0 = arith.constant 0 : i32
    return %arg0, %c0_i32 : i32, i32
  }
}

module attributes {stable_mosaic.version = 11 : i64} {
  func.func @kernel(%arg0: i32, %arg1: memref<8x128xf32, #tpu.memory_space<vmem>>, %arg2: memref<128x128xf32, #tpu.memory_space<vmem>>, %arg3: memref<1x128xf32, #tpu.memory_space<vmem>>, %arg4: memref<128x128xf32, #tpu.memory_space<vmem>>, %arg5: memref<1x128xf32, #tpu.memory_space<vmem>>, %arg6: memref<128x128xf32, #tpu.memory_space<vmem>>, %arg7: memref<1x128xf32, #tpu.memory_space<vmem>>, %arg8: memref<1x1xf32, #tpu.memory_space<smem>>, %arg9: memref<8x128xf32, #tpu.memory_space<vmem>>) attributes {dimension_semantics = [#tpu.dimension_semantics<parallel>], iteration_bounds = array<i64: 1>, scalar_prefetch = 0 : i64, scratch_operands = 0 : i64, tpu.core_type = #tpu.core_type<tc>, window_params = [{transform_indices = @transform_0, window_bounds = array<i64: 8, 128>}, {pipeline_mode = #tpu.pipeline_mode<synchronous>, transform_indices = @transform_1, window_bounds = array<i64: 128, 128>}, {pipeline_mode = #tpu.pipeline_mode<synchronous>, transform_indices = @transform_2, window_bounds = array<i64: 1, 128>}, {pipeline_mode = #tpu.pipeline_mode<synchronous>, transform_indices = @transform_3, window_bounds = array<i64: 128, 128>}, {pipeline_mode = #tpu.pipeline_mode<synchronous>, transform_indices = @transform_4, window_bounds = array<i64: 1, 128>}, {pipeline_mode = #tpu.pipeline_mode<synchronous>, transform_indices = @transform_5, window_bounds = array<i64: 128, 128>}, {pipeline_mode = #tpu.pipeline_mode<synchronous>, transform_indices = @transform_6, window_bounds = array<i64: 1, 128>}, {transform_indices = @transform_7, window_bounds = array<i64: 1, 1>}, {transform_indices = @transform_8, window_bounds = array<i64: 8, 128>}]} {
    %c0 = arith.constant 0 : index
    %c0_0 = arith.constant 0 : index
    %0 = vector.load %arg1[%c0, %c0_0] : memref<8x128xf32, #tpu.memory_space<vmem>>, vector<8x128xf32>
    %c0_1 = arith.constant 0 : index
    %c0_2 = arith.constant 0 : index
    %1 = vector.load %arg2[%c0_1, %c0_2] : memref<128x128xf32, #tpu.memory_space<vmem>>, vector<128x128xf32>
    %cst = arith.constant dense<0.000000e+00> : vector<8x128xf32>
    %2 = tpu.matmul %0, %1, %cst {dimension_numbers = #tpu.dot_dimension_numbers<[1], [0], [0], [1], [0, 0, 1, 1], [], []>} : vector<8x128xf32>, vector<128x128xf32>, vector<8x128xf32> -> vector<8x128xf32>
    %c0_3 = arith.constant 0 : index
    %c0_4 = arith.constant 0 : index
    %3 = vector.load %arg3[%c0_3, %c0_4] : memref<1x128xf32, #tpu.memory_space<vmem>>, vector<1x128xf32>
    %4 = vector.broadcast %3 : vector<1x128xf32> to vector<8x128xf32>
    %5 = arith.addf %2, %4 : vector<8x128xf32>
    %c0_5 = arith.constant 0 : index
    %c0_6 = arith.constant 0 : index
    %6 = memref.load %arg8[%c0_5, %c0_6] : memref<1x1xf32, #tpu.memory_space<smem>>
    %cst_7 = arith.constant 0.000000e+00 : f32
    %7 = vector.broadcast %cst_7 : f32 to vector<8x128xf32>
    %8 = arith.cmpf ogt, %5, %7 : vector<8x128xf32>
    %9 = vector.broadcast %6 : f32 to vector<8x128xf32>
    %10 = arith.mulf %9, %5 : vector<8x128xf32>
    %11 = arith.select %8, %5, %10 : vector<8x128xi1>, vector<8x128xf32>
    %c0_8 = arith.constant 0 : index
    %c0_9 = arith.constant 0 : index
    %12 = vector.load %arg4[%c0_8, %c0_9] : memref<128x128xf32, #tpu.memory_space<vmem>>, vector<128x128xf32>
    %cst_10 = arith.constant dense<0.000000e+00> : vector<8x128xf32>
    %13 = tpu.matmul %11, %12, %cst_10 {dimension_numbers = #tpu.dot_dimension_numbers<[1], [0], [0], [1], [0, 0, 1, 1], [], []>} : vector<8x128xf32>, vector<128x128xf32>, vector<8x128xf32> -> vector<8x128xf32>
    %c0_11 = arith.constant 0 : index
    %c0_12 = arith.constant 0 : index
    %14 = vector.load %arg5[%c0_11, %c0_12] : memref<1x128xf32, #tpu.memory_space<vmem>>, vector<1x128xf32>
    %15 = vector.broadcast %14 : vector<1x128xf32> to vector<8x128xf32>
    %16 = arith.addf %13, %15 : vector<8x128xf32>
    %c0_13 = arith.constant 0 : index
    %c0_14 = arith.constant 0 : index
    %17 = memref.load %arg8[%c0_13, %c0_14] : memref<1x1xf32, #tpu.memory_space<smem>>
    %cst_15 = arith.constant 0.000000e+00 : f32
    %18 = vector.broadcast %cst_15 : f32 to vector<8x128xf32>
    %19 = arith.cmpf ogt, %16, %18 : vector<8x128xf32>
    %20 = vector.broadcast %17 : f32 to vector<8x128xf32>
    %21 = arith.mulf %20, %16 : vector<8x128xf32>
    %22 = arith.select %19, %16, %21 : vector<8x128xi1>, vector<8x128xf32>
    %c0_16 = arith.constant 0 : index
    %c0_17 = arith.constant 0 : index
    %23 = vector.load %arg6[%c0_16, %c0_17] : memref<128x128xf32, #tpu.memory_space<vmem>>, vector<128x128xf32>
    %cst_18 = arith.constant dense<0.000000e+00> : vector<8x128xf32>
    %24 = tpu.matmul %22, %23, %cst_18 {dimension_numbers = #tpu.dot_dimension_numbers<[1], [0], [0], [1], [0, 0, 1, 1], [], []>} : vector<8x128xf32>, vector<128x128xf32>, vector<8x128xf32> -> vector<8x128xf32>
    %c0_19 = arith.constant 0 : index
    %c0_20 = arith.constant 0 : index
    %25 = vector.load %arg7[%c0_19, %c0_20] : memref<1x128xf32, #tpu.memory_space<vmem>>, vector<1x128xf32>
    %26 = vector.broadcast %25 : vector<1x128xf32> to vector<8x128xf32>
    %27 = arith.addf %24, %26 : vector<8x128xf32>
    %c0_21 = arith.constant 0 : index
    %c0_22 = arith.constant 0 : index
    %28 = vector.load %arg9[%c0_21, %c0_22] : memref<8x128xf32, #tpu.memory_space<vmem>>, vector<8x128xf32>
    tpu.vector_store %arg9[%c0_21, %c0_22], %27 {strides = array<i32>} : memref<8x128xf32, #tpu.memory_space<vmem>>, vector<8x128xf32>,
    return
  }
  func.func @transform_0(%arg0: i32) -> (i32, i32) {
    %c0_i32 = arith.constant 0 : i32
    %c0_i32_0 = arith.constant 0 : i32
    return %arg0, %c0_i32 : i32, i32
  }
  func.func @transform_1(%arg0: i32) -> (i32, i32) {
    %c0_i32 = arith.constant 0 : i32
    %c0_i32_0 = arith.constant 0 : i32
    %c0_i32_1 = arith.constant 0 : i32
    return %c0_i32, %c0_i32_0 : i32, i32
  }
  func.func @transform_2(%arg0: i32) -> (i32, i32) {
    %c0_i32 = arith.constant 0 : i32
    %c0_i32_0 = arith.constant 0 : i32
    %c0_i32_1 = arith.constant 0 : i32
    return %c0_i32, %c0_i32_0 : i32, i32
  }
  func.func @transform_3(%arg0: i32) -> (i32, i32) {
    %c0_i32 = arith.constant 0 : i32
    %c0_i32_0 = arith.constant 0 : i32
    %c0_i32_1 = arith.constant 0 : i32
    return %c0_i32, %c0_i32_0 : i32, i32
  }
  func.func @transform_4(%arg0: i32) -> (i32, i32) {
    %c0_i32 = arith.constant 0 : i32
    %c0_i32_0 = arith.constant 0 : i32
    %c0_i32_1 = arith.constant 0 : i32
    return %c0_i32, %c0_i32_0 : i32, i32
  }
  func.func @transform_5(%arg0: i32) -> (i32, i32) {
    %c0_i32 = arith.constant 0 : i32
    %c0_i32_0 = arith.constant 0 : i32
    %c0_i32_1 = arith.constant 0 : i32
    return %c0_i32, %c0_i32_0 : i32, i32
  }
  func.func @transform_6(%arg0: i32) -> (i32, i32) {
    %c0_i32 = arith.constant 0 : i32
    %c0_i32_0 = arith.constant 0 : i32
    %c0_i32_1 = arith.constant 0 : i32
    return %c0_i32, %c0_i32_0 : i32, i32
  }
  func.func @transform_7(%arg0: i32) -> (i32, i32) {
    %c0_i32 = arith.constant 0 : i32
    %c0_i32_0 = arith.constant 0 : i32
    %c0_i32_1 = arith.constant 0 : i32
    return %c0_i32, %c0_i32_0 : i32, i32
  }
  func.func @transform_8(%arg0: i32) -> (i32, i32) {
    %c0_i32 = arith.constant 0 : i32
    %c0_i32_0 = arith.constant 0 : i32
    return %arg0, %c0_i32 : i32, i32
  }
}

</mosaic_0001>

<llo_original>
// kernel: tpu_custom_call.1
$region0: #{tpu_custom_call.1}
  #allocation0 [shape = 'u32[]', space=smem, size = 0x4, offset = 0x4, fixed_abs, tag = 'smem constant byte address 0x4 - core index']
  #allocation1 [shape = 'u32[144,128]{1,0:T(1,128)}', space=vmem, size = 0x12000, scoped, tag = 'internal scratch']
  #allocation2 [shape = 'f32[1,1]{1,0:T(1,128)S(6)}', space=smem, size = 0x200, scoped, tag = 'scoped memory for tpu_custom_call.1']
  %s0 = inlined_call_operand.hbm [shape: f32[8,128], index: 0, kind: input, shape index: {}]
  %s1 = inlined_call_operand.hbm [shape: f32[128,128], index: 1, kind: input, shape index: {}]
  %s2 = inlined_call_operand.vmem [shape: f32[1,128], index: 2, kind: input, shape index: {}]
  %s3 = inlined_call_operand.hbm [shape: f32[128,128], index: 3, kind: input, shape index: {}]
  %s4 = inlined_call_operand.vmem [shape: f32[1,128], index: 4, kind: input, shape index: {}]
  %s5 = inlined_call_operand.hbm [shape: f32[128,128], index: 5, kind: input, shape index: {}]
  %s6 = inlined_call_operand.vmem [shape: f32[1,128], index: 6, kind: input, shape index: {}]
  %s7 = inlined_call_operand.<no memory space> [shape: f32[1,1], index: 7, kind: input, shape index: {}]
  %s8 = inlined_call_operand.hbm [shape: f32[8,128], index: 8, kind: output, shape index: {}]
  %s9 = sld [smem:[#allocation0]]
  $region58: #{tpu_custom_call.1} parent=0
    _
  %s11 = ssub.s32 1, %s9
  %s12 = scalar_select 0, %s11, %s9
  %13 = sst [smem:[#allocation2]] %s7
  $region1: #{tpu_custom_call.1} parent=0
    #allocation3 [shape = 'u8[4096]{0}', space=vmem, size = 0x1000, scoped, tag = 'input window, operand 0, single buffered']
    #allocation4 [shape = 's32[1]{0}', space=sflag, size = 0x4, scoped, tag = 'scoped memory for tpu_custom_call.1']
    #allocation5 [shape = 's32[1]{0}', space=sflag, size = 0x4, scoped, tag = 'scoped memory for tpu_custom_call.1']
    #allocation6 [shape = 'u8[65536]{0}', space=vmem, size = 0x10000, scoped, tag = 'input window, operand 1, single buffered']
    #allocation7 [shape = 's32[1]{0}', space=sflag, size = 0x4, scoped, tag = 'scoped memory for tpu_custom_call.1']
    #allocation8 [shape = 'u8[65536]{0}', space=vmem, size = 0x10000, scoped, tag = 'input window, operand 3, single buffered']
    #allocation9 [shape = 'u8[65536]{0}', space=vmem, size = 0x10000, scoped, tag = 'input window, operand 5, single buffered']
    #allocation10 [shape = 's32[1]{0}', space=sflag, size = 0x4, scoped, tag = 'scoped memory for tpu_custom_call.1']
    #allocation11 [shape = 'u8[4096]{0}', space=vmem, size = 0x1000, scoped, tag = 'output window, operand 0, single buffered']
    %14 = vsyncpa [#allocation4], 0
    %15 = vsyncpa [#allocation7], 0
    %16 = vsyncpa [#allocation10], 0
    %17 = vsyncpa [#allocation5], 0
    // Predicated region
    $region2: #{tpu_custom_call.1} parent=1 // pred_check
      _
    $region3: #{tpu_custom_call.1} parent=1 // pred_check_branch
      %19 = sbr.rel (0) target = $region5
    $region4: #{tpu_custom_call.1} parent=1 // pred_region
      %s21 = ssub.s32 128, 128
      %22 = vsyncadd [#allocation4], %s21
      %s24 = sshll.u32 [#allocation3], 4
      %s25 = int_to_ptr.vmem [resolvable:$true] %s24
      %27 = dma.hbm_to_vmem [thread:$0]  %s0, 128, %s25, [#allocation4]
    $region5: #{tpu_custom_call.1} parent=1 // pred_fallthru
      _
    // Predicated region
    $region6: #{tpu_custom_call.1} parent=1 // pred_check
      _
    $region7: #{tpu_custom_call.1} parent=1 // pred_check_branch
      %29 = sbr.rel (0) target = $region9
    $region8: #{tpu_custom_call.1} parent=1 // pred_region
      %s31 = ssub.s32 2048, 2048
      %32 = vsyncadd [#allocation7], %s31
      %s33 = sshll.u32 [#allocation6], 4
      %s34 = int_to_ptr.vmem [resolvable:$true] %s33
      %39 = dma.hbm_to_vmem [thread:$0]  %s1, 2048, %s34, [#allocation7], 128, 128, 8
    $region9: #{tpu_custom_call.1} parent=1 // pred_fallthru
      _
    // Predicated region
    $region10: #{tpu_custom_call.1} parent=1 // pred_check
      _
    $region11: #{tpu_custom_call.1} parent=1 // pred_check_branch
      %41 = sbr.rel (0) target = $region13
    $region12: #{tpu_custom_call.1} parent=1 // pred_region
      _
    $region13: #{tpu_custom_call.1} parent=1 // pred_fallthru
      _
    // Predicated region
    $region14: #{tpu_custom_call.1} parent=1 // pred_check
      _
    $region15: #{tpu_custom_call.1} parent=1 // pred_check_branch
      %43 = sbr.rel (0) target = $region17
    $region16: #{tpu_custom_call.1} parent=1 // pred_region
      %s45 = ssub.s32 2048, 2048
      %46 = vsyncadd [#allocation7], %s45
      %s47 = sshll.u32 [#allocation8], 4
      %s48 = int_to_ptr.vmem [resolvable:$true] %s47
      %53 = dma.hbm_to_vmem [thread:$0]  %s3, 2048, %s48, [#allocation7], 128, 128, 8
    $region17: #{tpu_custom_call.1} parent=1 // pred_fallthru
      _
    // Predicated region
    $region18: #{tpu_custom_call.1} parent=1 // pred_check
      _
    $region19: #{tpu_custom_call.1} parent=1 // pred_check_branch
      %55 = sbr.rel (0) target = $region21
    $region20: #{tpu_custom_call.1} parent=1 // pred_region
      _
    $region21: #{tpu_custom_call.1} parent=1 // pred_fallthru
      _
    // Predicated region
    $region22: #{tpu_custom_call.1} parent=1 // pred_check
      _
    $region23: #{tpu_custom_call.1} parent=1 // pred_check_branch
      %57 = sbr.rel (0) target = $region25
    $region24: #{tpu_custom_call.1} parent=1 // pred_region
      %s59 = ssub.s32 2048, 2048
      %60 = vsyncadd [#allocation10], %s59
      %s61 = sshll.u32 [#allocation9], 4
      %s62 = int_to_ptr.vmem [resolvable:$true] %s61
      %67 = dma.hbm_to_vmem [thread:$0]  %s5, 2048, %s62, [#allocation10], 128, 128, 8
    $region25: #{tpu_custom_call.1} parent=1 // pred_fallthru
      _
    // Predicated region
    $region26: #{tpu_custom_call.1} parent=1 // pred_check
      _
    $region27: #{tpu_custom_call.1} parent=1 // pred_check_branch
      %69 = sbr.rel (0) target = $region29
    $region28: #{tpu_custom_call.1} parent=1 // pred_region
      _
    $region29: #{tpu_custom_call.1} parent=1 // pred_fallthru
      _
    // Predicated region
    $region30: #{tpu_custom_call.1} parent=1 // pred_check
      _
    $region31: #{tpu_custom_call.1} parent=1 // pred_check_branch
      %71 = sbr.rel (0) target = $region33
    $region32: #{tpu_custom_call.1} parent=1 // pred_region
      _
    $region33: #{tpu_custom_call.1} parent=1 // pred_fallthru
      _
    // Predicated region
    $region34: #{tpu_custom_call.1} parent=1 // pred_check
      _
    $region35: #{tpu_custom_call.1} parent=1 // pred_check_branch
      %73 = sbr.rel (0) target = $region37
    $region36: #{tpu_custom_call.1} parent=1 // pred_region
      %74 = dma.done [#allocation4], 128
    $region37: #{tpu_custom_call.1} parent=1 // pred_fallthru
      _
    // Predicated region
    $region38: #{tpu_custom_call.1} parent=1 // pred_check
      _
    $region39: #{tpu_custom_call.1} parent=1 // pred_check_branch
      %76 = sbr.rel (0) target = $region41
    $region40: #{tpu_custom_call.1} parent=1 // pred_region
      %77 = dma.done [#allocation7], 2048
    $region41: #{tpu_custom_call.1} parent=1 // pred_fallthru
      _
    // Predicated region
    $region42: #{tpu_custom_call.1} parent=1 // pred_check
      _
    $region43: #{tpu_custom_call.1} parent=1 // pred_check_branch
      %79 = sbr.rel (0) target = $region45
    $region44: #{tpu_custom_call.1} parent=1 // pred_region
      %80 = dma.done [#allocation7], 2048
    $region45: #{tpu_custom_call.1} parent=1 // pred_fallthru
      _
    // Predicated region
    $region46: #{tpu_custom_call.1} parent=1 // pred_check
      _
    $region47: #{tpu_custom_call.1} parent=1 // pred_check_branch
      %82 = sbr.rel (0) target = $region49
    $region48: #{tpu_custom_call.1} parent=1 // pred_region
      %83 = dma.done [#allocation10], 2048
    $region49: #{tpu_custom_call.1} parent=1 // pred_fallthru
      _
    %v84 = vld [vmem:[#allocation3] sm:$0xff]
    %v85 = vld [vmem:[#allocation6] sm:$0xff]
    %v86 = vld [vmem:[#allocation6 + $0x8] sm:$0xff]
    %v87 = vld [vmem:[#allocation6 + $0x10] sm:$0xff]
    %v88 = vld [vmem:[#allocation6 + $0x18] sm:$0xff]
    %v89 = vld [vmem:[#allocation6 + $0x20] sm:$0xff]
    %v90 = vld [vmem:[#allocation6 + $0x28] sm:$0xff]
    %v91 = vld [vmem:[#allocation6 + $0x30] sm:$0xff]
    %v92 = vld [vmem:[#allocation6 + $0x38] sm:$0xff]
    %v93 = vld [vmem:[#allocation6 + $0x40] sm:$0xff]
    %v94 = vld [vmem:[#allocation6 + $0x48] sm:$0xff]
    %v95 = vld [vmem:[#allocation6 + $0x50] sm:$0xff]
    %v96 = vld [vmem:[#allocation6 + $0x58] sm:$0xff]
    %v97 = vld [vmem:[#allocation6 + $0x60] sm:$0xff]
    %v98 = vld [vmem:[#allocation6 + $0x68] sm:$0xff]
    %v99 = vld [vmem:[#allocation6 + $0x70] sm:$0xff]
    %v100 = vld [vmem:[#allocation6 + $0x78] sm:$0xff]
    %v101 = vld [vmem:[%s2] sm:$0x1]
    %v103 = vlaneseq
    %v104 = vshrl.u32 %v103, 7
    %v105 = vsub.s32 0, %v104
    %v106 = vrot.slane %v101, %v105
    %108 = vmatprep.subr.mxu0 0.0
    %109 = vmatpush1.msra.mxu0 %v100
    %110 = vmatprep.subr.mxu0 0.0
    %111 = vmatpush1.msra.mxu0 %v99
    %112 = vmatprep.subr.mxu0 0.0
    %113 = vmatpush1.msra.mxu0 %v98
    %114 = vmatprep.subr.mxu0 0.0
    %115 = vmatpush1.msra.mxu0 %v97
    %116 = vmatprep.subr.mxu0 0.0
    %117 = vmatpush1.msra.mxu0 %v96
    %118 = vmatprep.subr.mxu0 0.0
    %119 = vmatpush1.msra.mxu0 %v95
    %120 = vmatprep.subr.mxu0 0.0
    %121 = vmatpush1.msra.mxu0 %v94
    %122 = vmatprep.subr.mxu0 0.0
    %123 = vmatpush1.msra.mxu0 %v93
    %124 = vmatprep.subr.mxu0 0.0
    %125 = vmatpush1.msra.mxu0 %v92
    %126 = vmatprep.subr.mxu0 0.0
    %127 = vmatpush1.msra.mxu0 %v91
    %128 = vmatprep.subr.mxu0 0.0
    %129 = vmatpush1.msra.mxu0 %v90
    %130 = vmatprep.subr.mxu0 0.0
    %131 = vmatpush1.msra.mxu0 %v89
    %132 = vmatprep.subr.mxu0 0.0
    %133 = vmatpush1.msra.mxu0 %v88
    %134 = vmatprep.subr.mxu0 0.0
    %135 = vmatpush1.msra.mxu0 %v87
    %136 = vmatprep.subr.mxu0 0.0
    %137 = vmatpush1.msra.mxu0 %v86
    %138 = vmatprep.subr.mxu0 0.0
    %139 = vmatpush1.msra.mxu0 %v85
    %140 = vmatprep.subr.mxu0 0.0
    %141 = vmatpush2.msra.mxu0 0.0
    %142 = vmatprep.subr.mxu0 0.0
    %143 = vmatpush2.msra.mxu0 0.0
    %144 = vmatprep.subr.mxu0 0.0
    %145 = vmatpush2.msra.mxu0 0.0
    %146 = vmatprep.subr.mxu0 0.0
    %147 = vmatpush2.msra.mxu0 0.0
    %148 = vmatprep.subr.mxu0 0.0
    %149 = vmatpush2.msra.mxu0 0.0
    %150 = vmatprep.subr.mxu0 0.0
    %151 = vmatpush2.msra.mxu0 0.0
    %152 = vmatprep.subr.mxu0 0.0
    %153 = vmatpush2.msra.mxu0 0.0
    %154 = vmatprep.subr.mxu0 0.0
    %155 = vmatpush2.msra.mxu0 0.0
    %156 = vmatprep.subr.mxu0 0.0
    %157 = vmatpush2.msra.mxu0 0.0
    %158 = vmatprep.subr.mxu0 0.0
    %159 = vmatpush2.msra.mxu0 0.0
    %160 = vmatprep.subr.mxu0 0.0
    %161 = vmatpush2.msra.mxu0 0.0
    %162 = vmatprep.subr.mxu0 0.0
    %163 = vmatpush2.msra.mxu0 0.0
    %164 = vmatprep.subr.mxu0 0.0
    %165 = vmatpush2.msra.mxu0 0.0
    %166 = vmatprep.subr.mxu0 0.0
    %167 = vmatpush2.msra.mxu0 0.0
    %168 = vmatprep.subr.mxu0 0.0
    %169 = vmatpush2.msra.mxu0 0.0
    %170 = vmatprep.subr.mxu0 0.0
    %171 = vmatpush2.msra.mxu0 0.0
    %172 = vmatprep.mubr.f32.mxu0 0.0
    %173 = vmatmul.mubr.f32.gmra.mxu0 %v84
    %v174 = vpop.f32.mrf.mxu0
    %v175 = vadd.f32 %v106, %v174
    %v176 = vpop.f32.mrf.mxu0
    %177 = vdwg.mxu0
    %s178 = sld [smem:[#allocation2]]
    %vm179 = vcmp.gt.f32.partialorder %v175, 0.0
    %v180 = vstv %s178
    %v181 = vmul.f32 %v180, %v175
    %v182 = vsel %vm179, %v175, %v181
    %v183 = vld [vmem:[#allocation8] sm:$0xff]
    %v184 = vld [vmem:[#allocation8 + $0x8] sm:$0xff]
    %v185 = vld [vmem:[#allocation8 + $0x10] sm:$0xff]
    %v186 = vld [vmem:[#allocation8 + $0x18] sm:$0xff]
    %v187 = vld [vmem:[#allocation8 + $0x20] sm:$0xff]
    %v188 = vld [vmem:[#allocation8 + $0x28] sm:$0xff]
    %v189 = vld [vmem:[#allocation8 + $0x30] sm:$0xff]
    %v190 = vld [vmem:[#allocation8 + $0x38] sm:$0xff]
    %v191 = vld [vmem:[#allocation8 + $0x40] sm:$0xff]
    %v192 = vld [vmem:[#allocation8 + $0x48] sm:$0xff]
    %v193 = vld [vmem:[#allocation8 + $0x50] sm:$0xff]
    %v194 = vld [vmem:[#allocation8 + $0x58] sm:$0xff]
    %v195 = vld [vmem:[#allocation8 + $0x60] sm:$0xff]
    %v196 = vld [vmem:[#allocation8 + $0x68] sm:$0xff]
    %v197 = vld [vmem:[#allocation8 + $0x70] sm:$0xff]
    %v198 = vld [vmem:[#allocation8 + $0x78] sm:$0xff]
    %v199 = vld [vmem:[%s4] sm:$0x1]
    %v201 = vlaneseq
    %v202 = vshrl.u32 %v201, 7
    %v203 = vsub.s32 0, %v202
    %v204 = vrot.slane %v199, %v203
    %206 = vmatprep.subr.mxu0 0.0
    %207 = vmatpush1.msra.mxu0 %v198
    %208 = vmatprep.subr.mxu0 0.0
    %209 = vmatpush1.msra.mxu0 %v197
    %210 = vmatprep.subr.mxu0 0.0
    %211 = vmatpush1.msra.mxu0 %v196
    %212 = vmatprep.subr.mxu0 0.0
    %213 = vmatpush1.msra.mxu0 %v195
    %214 = vmatprep.subr.mxu0 0.0
    %215 = vmatpush1.msra.mxu0 %v194
    %216 = vmatprep.subr.mxu0 0.0
    %217 = vmatpush1.msra.mxu0 %v193
    %218 = vmatprep.subr.mxu0 0.0
    %219 = vmatpush1.msra.mxu0 %v192
    %220 = vmatprep.subr.mxu0 0.0
    %221 = vmatpush1.msra.mxu0 %v191
    %222 = vmatprep.subr.mxu0 0.0
    %223 = vmatpush1.msra.mxu0 %v190
    %224 = vmatprep.subr.mxu0 0.0
    %225 = vmatpush1.msra.mxu0 %v189
    %226 = vmatprep.subr.mxu0 0.0
    %227 = vmatpush1.msra.mxu0 %v188
    %228 = vmatprep.subr.mxu0 0.0
    %229 = vmatpush1.msra.mxu0 %v187
    %230 = vmatprep.subr.mxu0 0.0
    %231 = vmatpush1.msra.mxu0 %v186
    %232 = vmatprep.subr.mxu0 0.0
    %233 = vmatpush1.msra.mxu0 %v185
    %234 = vmatprep.subr.mxu0 0.0
    %235 = vmatpush1.msra.mxu0 %v184
    %236 = vmatprep.subr.mxu0 0.0
    %237 = vmatpush1.msra.mxu0 %v183
    %238 = vmatprep.subr.mxu0 0.0
    %239 = vmatpush2.msra.mxu0 0.0
    %240 = vmatprep.subr.mxu0 0.0
    %241 = vmatpush2.msra.mxu0 0.0
    %242 = vmatprep.subr.mxu0 0.0
    %243 = vmatpush2.msra.mxu0 0.0
    %244 = vmatprep.subr.mxu0 0.0
    %245 = vmatpush2.msra.mxu0 0.0
    %246 = vmatprep.subr.mxu0 0.0
    %247 = vmatpush2.msra.mxu0 0.0
    %248 = vmatprep.subr.mxu0 0.0
    %249 = vmatpush2.msra.mxu0 0.0
    %250 = vmatprep.subr.mxu0 0.0
    %251 = vmatpush2.msra.mxu0 0.0
    %252 = vmatprep.subr.mxu0 0.0
    %253 = vmatpush2.msra.mxu0 0.0
    %254 = vmatprep.subr.mxu0 0.0
    %255 = vmatpush2.msra.mxu0 0.0
    %256 = vmatprep.subr.mxu0 0.0
    %257 = vmatpush2.msra.mxu0 0.0
    %258 = vmatprep.subr.mxu0 0.0
    %259 = vmatpush2.msra.mxu0 0.0
    %260 = vmatprep.subr.mxu0 0.0
    %261 = vmatpush2.msra.mxu0 0.0
    %262 = vmatprep.subr.mxu0 0.0
    %263 = vmatpush2.msra.mxu0 0.0
    %264 = vmatprep.subr.mxu0 0.0
    %265 = vmatpush2.msra.mxu0 0.0
    %266 = vmatprep.subr.mxu0 0.0
    %267 = vmatpush2.msra.mxu0 0.0
    %268 = vmatprep.subr.mxu0 0.0
    %269 = vmatpush2.msra.mxu0 0.0
    %270 = vmatprep.mubr.f32.mxu0 0.0
    %271 = vmatmul.mubr.f32.gmra.mxu0 %v182
    %v272 = vpop.f32.mrf.mxu0
    %v273 = vadd.f32 %v204, %v272
    %v274 = vpop.f32.mrf.mxu0
    %275 = vdwg.mxu0
    %vm276 = vcmp.gt.f32.partialorder %v273, 0.0
    %v277 = vmul.f32 %v180, %v273
    %v278 = vsel %vm276, %v273, %v277
    %v279 = vld [vmem:[#allocation9] sm:$0xff]
    %v280 = vld [vmem:[#allocation9 + $0x8] sm:$0xff]
    %v281 = vld [vmem:[#allocation9 + $0x10] sm:$0xff]
    %v282 = vld [vmem:[#allocation9 + $0x18] sm:$0xff]
    %v283 = vld [vmem:[#allocation9 + $0x20] sm:$0xff]
    %v284 = vld [vmem:[#allocation9 + $0x28] sm:$0xff]
    %v285 = vld [vmem:[#allocation9 + $0x30] sm:$0xff]
    %v286 = vld [vmem:[#allocation9 + $0x38] sm:$0xff]
    %v287 = vld [vmem:[#allocation9 + $0x40] sm:$0xff]
    %v288 = vld [vmem:[#allocation9 + $0x48] sm:$0xff]
    %v289 = vld [vmem:[#allocation9 + $0x50] sm:$0xff]
    %v290 = vld [vmem:[#allocation9 + $0x58] sm:$0xff]
    %v291 = vld [vmem:[#allocation9 + $0x60] sm:$0xff]
    %v292 = vld [vmem:[#allocation9 + $0x68] sm:$0xff]
    %v293 = vld [vmem:[#allocation9 + $0x70] sm:$0xff]
    %v294 = vld [vmem:[#allocation9 + $0x78] sm:$0xff]
    %v295 = vld [vmem:[%s6] sm:$0x1]
    %v297 = vlaneseq
    %v298 = vshrl.u32 %v297, 7
    %v299 = vsub.s32 0, %v298
    %v300 = vrot.slane %v295, %v299
    %302 = vmatprep.subr.mxu0 0.0
    %303 = vmatpush1.msra.mxu0 %v294
    %304 = vmatprep.subr.mxu0 0.0
    %305 = vmatpush1.msra.mxu0 %v293
    %306 = vmatprep.subr.mxu0 0.0
    %307 = vmatpush1.msra.mxu0 %v292
    %308 = vmatprep.subr.mxu0 0.0
    %309 = vmatpush1.msra.mxu0 %v291
    %310 = vmatprep.subr.mxu0 0.0
    %311 = vmatpush1.msra.mxu0 %v290
    %312 = vmatprep.subr.mxu0 0.0
    %313 = vmatpush1.msra.mxu0 %v289
    %314 = vmatprep.subr.mxu0 0.0
    %315 = vmatpush1.msra.mxu0 %v288
    %316 = vmatprep.subr.mxu0 0.0
    %317 = vmatpush1.msra.mxu0 %v287
    %318 = vmatprep.subr.mxu0 0.0
    %319 = vmatpush1.msra.mxu0 %v286
    %320 = vmatprep.subr.mxu0 0.0
    %321 = vmatpush1.msra.mxu0 %v285
    %322 = vmatprep.subr.mxu0 0.0
    %323 = vmatpush1.msra.mxu0 %v284
    %324 = vmatprep.subr.mxu0 0.0
    %325 = vmatpush1.msra.mxu0 %v283
    %326 = vmatprep.subr.mxu0 0.0
    %327 = vmatpush1.msra.mxu0 %v282
    %328 = vmatprep.subr.mxu0 0.0
    %329 = vmatpush1.msra.mxu0 %v281
    %330 = vmatprep.subr.mxu0 0.0
    %331 = vmatpush1.msra.mxu0 %v280
    %332 = vmatprep.subr.mxu0 0.0
    %333 = vmatpush1.msra.mxu0 %v279
    %334 = vmatprep.subr.mxu0 0.0
    %335 = vmatpush2.msra.mxu0 0.0
    %336 = vmatprep.subr.mxu0 0.0
    %337 = vmatpush2.msra.mxu0 0.0
    %338 = vmatprep.subr.mxu0 0.0
    %339 = vmatpush2.msra.mxu0 0.0
    %340 = vmatprep.subr.mxu0 0.0
    %341 = vmatpush2.msra.mxu0 0.0
    %342 = vmatprep.subr.mxu0 0.0
    %343 = vmatpush2.msra.mxu0 0.0
    %344 = vmatprep.subr.mxu0 0.0
    %345 = vmatpush2.msra.mxu0 0.0
    %346 = vmatprep.subr.mxu0 0.0
    %347 = vmatpush2.msra.mxu0 0.0
    %348 = vmatprep.subr.mxu0 0.0
    %349 = vmatpush2.msra.mxu0 0.0
    %350 = vmatprep.subr.mxu0 0.0
    %351 = vmatpush2.msra.mxu0 0.0
    %352 = vmatprep.subr.mxu0 0.0
    %353 = vmatpush2.msra.mxu0 0.0
    %354 = vmatprep.subr.mxu0 0.0
    %355 = vmatpush2.msra.mxu0 0.0
    %356 = vmatprep.subr.mxu0 0.0
    %357 = vmatpush2.msra.mxu0 0.0
    %358 = vmatprep.subr.mxu0 0.0
    %359 = vmatpush2.msra.mxu0 0.0
    %360 = vmatprep.subr.mxu0 0.0
    %361 = vmatpush2.msra.mxu0 0.0
    %362 = vmatprep.subr.mxu0 0.0
    %363 = vmatpush2.msra.mxu0 0.0
    %364 = vmatprep.subr.mxu0 0.0
    %365 = vmatpush2.msra.mxu0 0.0
    %366 = vmatprep.mubr.f32.mxu0 0.0
    %367 = vmatmul.mubr.f32.gmra.mxu0 %v278
    %v368 = vpop.f32.mrf.mxu0
    %v369 = vadd.f32 %v300, %v368
    %v370 = vpop.f32.mrf.mxu0
    %371 = vdwg.mxu0
    %372 = vst [vmem:[#allocation11] sm:$0xff] %v369
    // Predicated region
    $region50: #{tpu_custom_call.1} parent=1 // pred_check
      _
    $region51: #{tpu_custom_call.1} parent=1 // pred_check_branch
      %374 = sbr.rel (0) target = $region53
    $region52: #{tpu_custom_call.1} parent=1 // pred_region
      %s376 = ssub.s32 128, 128
      %377 = vsyncadd [#allocation5], %s376
      %s379 = sshll.u32 [#allocation11], 4
      %s380 = int_to_ptr.vmem [resolvable:$true] %s379
      %382 = dma.vmem_to_hbm [thread:$0]  %s380, 128, %s8, [#allocation5]
    $region53: #{tpu_custom_call.1} parent=1 // pred_fallthru
      _
    // Predicated region
    $region54: #{tpu_custom_call.1} parent=1 // pred_check
      _
    $region55: #{tpu_custom_call.1} parent=1 // pred_check_branch
      %384 = sbr.rel (0) target = $region57
    $region56: #{tpu_custom_call.1} parent=1 // pred_region
      %385 = dma.done [#allocation5], 128
    $region57: #{tpu_custom_call.1} parent=1 // pred_fallthru
      _
    %386 = vsyncpa [#allocation4], 1
    %387 = vsyncpa [#allocation7], 1
    %388 = vsyncpa [#allocation10], 1
    %389 = vsyncpa [#allocation5], 1

// kernel: tpu_custom_call.1
$region0: #{tpu_custom_call.1}
  #allocation0 [shape = 'u32[]', space=smem, size = 0x4, offset = 0x4, fixed_abs, tag = 'smem constant byte address 0x4 - core index']
  #allocation1 [shape = 'u32[144,128]{1,0:T(1,128)}', space=vmem, size = 0x12000, scoped, tag = 'internal scratch']
  #allocation2 [shape = 'f32[1,1]{1,0:T(1,128)S(6)}', space=smem, size = 0x200, scoped, tag = 'scoped memory for tpu_custom_call.1']
  %s0 = inlined_call_operand.hbm [shape: f32[8,128], index: 0, kind: input, shape index: {}]
  %s1 = inlined_call_operand.hbm [shape: f32[128,128], index: 1, kind: input, shape index: {}]
  %s2 = inlined_call_operand.vmem [shape: f32[1,128], index: 2, kind: input, shape index: {}]
  %s3 = inlined_call_operand.hbm [shape: f32[128,128], index: 3, kind: input, shape index: {}]
  %s4 = inlined_call_operand.vmem [shape: f32[1,128], index: 4, kind: input, shape index: {}]
  %s5 = inlined_call_operand.hbm [shape: f32[128,128], index: 5, kind: input, shape index: {}]
  %s6 = inlined_call_operand.vmem [shape: f32[1,128], index: 6, kind: input, shape index: {}]
  %s7 = inlined_call_operand.<no memory space> [shape: f32[1,1], index: 7, kind: input, shape index: {}]
  %s8 = inlined_call_operand.hbm [shape: f32[8,128], index: 8, kind: output, shape index: {}]
  %s9 = sld [smem:[#allocation0]]
  $region58: #{tpu_custom_call.1} parent=0
    _
  %s11 = ssub.s32 1, %s9
  %s12 = scalar_select 0, %s11, %s9
  %13 = sst [smem:[#allocation2]] %s7
  $region1: #{tpu_custom_call.1} parent=0
    #allocation3 [shape = 'u8[4096]{0}', space=vmem, size = 0x1000, scoped, tag = 'input window, operand 0, single buffered']
    #allocation4 [shape = 's32[1]{0}', space=sflag, size = 0x4, scoped, tag = 'scoped memory for tpu_custom_call.1']
    #allocation5 [shape = 's32[1]{0}', space=sflag, size = 0x4, scoped, tag = 'scoped memory for tpu_custom_call.1']
    #allocation6 [shape = 'u8[65536]{0}', space=vmem, size = 0x10000, scoped, tag = 'input window, operand 1, single buffered']
    #allocation7 [shape = 's32[1]{0}', space=sflag, size = 0x4, scoped, tag = 'scoped memory for tpu_custom_call.1']
    #allocation8 [shape = 'u8[65536]{0}', space=vmem, size = 0x10000, scoped, tag = 'input window, operand 3, single buffered']
    #allocation9 [shape = 'u8[65536]{0}', space=vmem, size = 0x10000, scoped, tag = 'input window, operand 5, single buffered']
    #allocation10 [shape = 's32[1]{0}', space=sflag, size = 0x4, scoped, tag = 'scoped memory for tpu_custom_call.1']
    #allocation11 [shape = 'u8[4096]{0}', space=vmem, size = 0x1000, scoped, tag = 'output window, operand 0, single buffered']
    %14 = vsyncpa [#allocation4], 0
    %15 = vsyncpa [#allocation7], 0
    %16 = vsyncpa [#allocation10], 0
    %17 = vsyncpa [#allocation5], 0
    // Predicated region
    $region2: #{tpu_custom_call.1} parent=1 // pred_check
      _
    $region3: #{tpu_custom_call.1} parent=1 // pred_check_branch
      %19 = sbr.rel (0) target = $region5
    $region4: #{tpu_custom_call.1} parent=1 // pred_region
      %s21 = ssub.s32 128, 128
      %22 = vsyncadd [#allocation4], %s21
      %s24 = sshll.u32 [#allocation3], 4
      %s25 = int_to_ptr.vmem [resolvable:$true] %s24
      %27 = dma.hbm_to_vmem [thread:$0]  %s0, 128, %s25, [#allocation4]
    $region5: #{tpu_custom_call.1} parent=1 // pred_fallthru
      _
    // Predicated region
    $region6: #{tpu_custom_call.1} parent=1 // pred_check
      _
    $region7: #{tpu_custom_call.1} parent=1 // pred_check_branch
      %29 = sbr.rel (0) target = $region9
    $region8: #{tpu_custom_call.1} parent=1 // pred_region
      %s31 = ssub.s32 2048, 2048
      %32 = vsyncadd [#allocation7], %s31
      %s33 = sshll.u32 [#allocation6], 4
      %s34 = int_to_ptr.vmem [resolvable:$true] %s33
      %39 = dma.hbm_to_vmem [thread:$0]  %s1, 2048, %s34, [#allocation7], 128, 128, 8
    $region9: #{tpu_custom_call.1} parent=1 // pred_fallthru
      _
    // Predicated region
    $region10: #{tpu_custom_call.1} parent=1 // pred_check
      _
    $region11: #{tpu_custom_call.1} parent=1 // pred_check_branch
      %41 = sbr.rel (0) target = $region13
    $region12: #{tpu_custom_call.1} parent=1 // pred_region
      _
    $region13: #{tpu_custom_call.1} parent=1 // pred_fallthru
      _
    // Predicated region
    $region14: #{tpu_custom_call.1} parent=1 // pred_check
      _
    $region15: #{tpu_custom_call.1} parent=1 // pred_check_branch
      %43 = sbr.rel (0) target = $region17
    $region16: #{tpu_custom_call.1} parent=1 // pred_region
      %s45 = ssub.s32 2048, 2048
      %46 = vsyncadd [#allocation7], %s45
      %s47 = sshll.u32 [#allocation8], 4
      %s48 = int_to_ptr.vmem [resolvable:$true] %s47
      %53 = dma.hbm_to_vmem [thread:$0]  %s3, 2048, %s48, [#allocation7], 128, 128, 8
    $region17: #{tpu_custom_call.1} parent=1 // pred_fallthru
      _
    // Predicated region
    $region18: #{tpu_custom_call.1} parent=1 // pred_check
      _
    $region19: #{tpu_custom_call.1} parent=1 // pred_check_branch
      %55 = sbr.rel (0) target = $region21
    $region20: #{tpu_custom_call.1} parent=1 // pred_region
      _
    $region21: #{tpu_custom_call.1} parent=1 // pred_fallthru
      _
    // Predicated region
    $region22: #{tpu_custom_call.1} parent=1 // pred_check
      _
    $region23: #{tpu_custom_call.1} parent=1 // pred_check_branch
      %57 = sbr.rel (0) target = $region25
    $region24: #{tpu_custom_call.1} parent=1 // pred_region
      %s59 = ssub.s32 2048, 2048
      %60 = vsyncadd [#allocation10], %s59
      %s61 = sshll.u32 [#allocation9], 4
      %s62 = int_to_ptr.vmem [resolvable:$true] %s61
      %67 = dma.hbm_to_vmem [thread:$0]  %s5, 2048, %s62, [#allocation10], 128, 128, 8
    $region25: #{tpu_custom_call.1} parent=1 // pred_fallthru
      _
    // Predicated region
    $region26: #{tpu_custom_call.1} parent=1 // pred_check
      _
    $region27: #{tpu_custom_call.1} parent=1 // pred_check_branch
      %69 = sbr.rel (0) target = $region29
    $region28: #{tpu_custom_call.1} parent=1 // pred_region
      _
    $region29: #{tpu_custom_call.1} parent=1 // pred_fallthru
      _
    // Predicated region
    $region30: #{tpu_custom_call.1} parent=1 // pred_check
      _
    $region31: #{tpu_custom_call.1} parent=1 // pred_check_branch
      %71 = sbr.rel (0) target = $region33
    $region32: #{tpu_custom_call.1} parent=1 // pred_region
      _
    $region33: #{tpu_custom_call.1} parent=1 // pred_fallthru
      _
    // Predicated region
    $region34: #{tpu_custom_call.1} parent=1 // pred_check
      _
    $region35: #{tpu_custom_call.1} parent=1 // pred_check_branch
      %73 = sbr.rel (0) target = $region37
    $region36: #{tpu_custom_call.1} parent=1 // pred_region
      %74 = dma.done [#allocation4], 128
    $region37: #{tpu_custom_call.1} parent=1 // pred_fallthru
      _
    // Predicated region
    $region38: #{tpu_custom_call.1} parent=1 // pred_check
      _
    $region39: #{tpu_custom_call.1} parent=1 // pred_check_branch
      %76 = sbr.rel (0) target = $region41
    $region40: #{tpu_custom_call.1} parent=1 // pred_region
      %77 = dma.done [#allocation7], 2048
    $region41: #{tpu_custom_call.1} parent=1 // pred_fallthru
      _
    // Predicated region
    $region42: #{tpu_custom_call.1} parent=1 // pred_check
      _
    $region43: #{tpu_custom_call.1} parent=1 // pred_check_branch
      %79 = sbr.rel (0) target = $region45
    $region44: #{tpu_custom_call.1} parent=1 // pred_region
      %80 = dma.done [#allocation7], 2048
    $region45: #{tpu_custom_call.1} parent=1 // pred_fallthru
      _
    // Predicated region
    $region46: #{tpu_custom_call.1} parent=1 // pred_check
      _
    $region47: #{tpu_custom_call.1} parent=1 // pred_check_branch
      %82 = sbr.rel (0) target = $region49
    $region48: #{tpu_custom_call.1} parent=1 // pred_region
      %83 = dma.done [#allocation10], 2048
    $region49: #{tpu_custom_call.1} parent=1 // pred_fallthru
      _
    %v84 = vld [vmem:[#allocation3] sm:$0xff]
    %v85 = vld [vmem:[#allocation6] sm:$0xff]
    %v86 = vld [vmem:[#allocation6 + $0x8] sm:$0xff]
    %v87 = vld [vmem:[#allocation6 + $0x10] sm:$0xff]
    %v88 = vld [vmem:[#allocation6 + $0x18] sm:$0xff]
    %v89 = vld [vmem:[#allocation6 + $0x20] sm:$0xff]
    %v90 = vld [vmem:[#allocation6 + $0x28] sm:$0xff]
    %v91 = vld [vmem:[#allocation6 + $0x30] sm:$0xff]
    %v92 = vld [vmem:[#allocation6 + $0x38] sm:$0xff]
    %v93 = vld [vmem:[#allocation6 + $0x40] sm:$0xff]
    %v94 = vld [vmem:[#allocation6 + $0x48] sm:$0xff]
    %v95 = vld [vmem:[#allocation6 + $0x50] sm:$0xff]
    %v96 = vld [vmem:[#allocation6 + $0x58] sm:$0xff]
    %v97 = vld [vmem:[#allocation6 + $0x60] sm:$0xff]
    %v98 = vld [vmem:[#allocation6 + $0x68] sm:$0xff]
    %v99 = vld [vmem:[#allocation6 + $0x70] sm:$0xff]
    %v100 = vld [vmem:[#allocation6 + $0x78] sm:$0xff]
    %v101 = vld [vmem:[%s2] sm:$0x1]
    %v103 = vlaneseq
    %v104 = vshrl.u32 %v103, 7
    %v105 = vsub.s32 0, %v104
    %v106 = vrot.slane %v101, %v105
    %108 = vmatprep.subr.mxu0 0.0
    %109 = vmatpush1.msra.mxu0 %v100
    %110 = vmatprep.subr.mxu0 0.0
    %111 = vmatpush1.msra.mxu0 %v99
    %112 = vmatprep.subr.mxu0 0.0
    %113 = vmatpush1.msra.mxu0 %v98
    %114 = vmatprep.subr.mxu0 0.0
    %115 = vmatpush1.msra.mxu0 %v97
    %116 = vmatprep.subr.mxu0 0.0
    %117 = vmatpush1.msra.mxu0 %v96
    %118 = vmatprep.subr.mxu0 0.0
    %119 = vmatpush1.msra.mxu0 %v95
    %120 = vmatprep.subr.mxu0 0.0
    %121 = vmatpush1.msra.mxu0 %v94
    %122 = vmatprep.subr.mxu0 0.0
    %123 = vmatpush1.msra.mxu0 %v93
    %124 = vmatprep.subr.mxu0 0.0
    %125 = vmatpush1.msra.mxu0 %v92
    %126 = vmatprep.subr.mxu0 0.0
    %127 = vmatpush1.msra.mxu0 %v91
    %128 = vmatprep.subr.mxu0 0.0
    %129 = vmatpush1.msra.mxu0 %v90
    %130 = vmatprep.subr.mxu0 0.0
    %131 = vmatpush1.msra.mxu0 %v89
    %132 = vmatprep.subr.mxu0 0.0
    %133 = vmatpush1.msra.mxu0 %v88
    %134 = vmatprep.subr.mxu0 0.0
    %135 = vmatpush1.msra.mxu0 %v87
    %136 = vmatprep.subr.mxu0 0.0
    %137 = vmatpush1.msra.mxu0 %v86
    %138 = vmatprep.subr.mxu0 0.0
    %139 = vmatpush1.msra.mxu0 %v85
    %140 = vmatprep.subr.mxu0 0.0
    %141 = vmatpush2.msra.mxu0 0.0
    %142 = vmatprep.subr.mxu0 0.0
    %143 = vmatpush2.msra.mxu0 0.0
    %144 = vmatprep.subr.mxu0 0.0
    %145 = vmatpush2.msra.mxu0 0.0
    %146 = vmatprep.subr.mxu0 0.0
    %147 = vmatpush2.msra.mxu0 0.0
    %148 = vmatprep.subr.mxu0 0.0
    %149 = vmatpush2.msra.mxu0 0.0
    %150 = vmatprep.subr.mxu0 0.0
    %151 = vmatpush2.msra.mxu0 0.0
    %152 = vmatprep.subr.mxu0 0.0
    %153 = vmatpush2.msra.mxu0 0.0
    %154 = vmatprep.subr.mxu0 0.0
    %155 = vmatpush2.msra.mxu0 0.0
    %156 = vmatprep.subr.mxu0 0.0
    %157 = vmatpush2.msra.mxu0 0.0
    %158 = vmatprep.subr.mxu0 0.0
    %159 = vmatpush2.msra.mxu0 0.0
    %160 = vmatprep.subr.mxu0 0.0
    %161 = vmatpush2.msra.mxu0 0.0
    %162 = vmatprep.subr.mxu0 0.0
    %163 = vmatpush2.msra.mxu0 0.0
    %164 = vmatprep.subr.mxu0 0.0
    %165 = vmatpush2.msra.mxu0 0.0
    %166 = vmatprep.subr.mxu0 0.0
    %167 = vmatpush2.msra.mxu0 0.0
    %168 = vmatprep.subr.mxu0 0.0
    %169 = vmatpush2.msra.mxu0 0.0
    %170 = vmatprep.subr.mxu0 0.0
    %171 = vmatpush2.msra.mxu0 0.0
    %172 = vmatprep.mubr.f32.mxu0 0.0
    %173 = vmatmul.mubr.f32.gmra.mxu0 %v84
    %v174 = vpop.f32.mrf.mxu0
    %v175 = vadd.f32 %v106, %v174
    %v176 = vpop.f32.mrf.mxu0
    %177 = vdwg.mxu0
    %s178 = sld [smem:[#allocation2]]
    %vm179 = vcmp.gt.f32.partialorder %v175, 0.0
    %v180 = vstv %s178
    %v181 = vmul.f32 %v180, %v175
    %v182 = vsel %vm179, %v175, %v181
    %v183 = vld [vmem:[#allocation8] sm:$0xff]
    %v184 = vld [vmem:[#allocation8 + $0x8] sm:$0xff]
    %v185 = vld [vmem:[#allocation8 + $0x10] sm:$0xff]
    %v186 = vld [vmem:[#allocation8 + $0x18] sm:$0xff]
    %v187 = vld [vmem:[#allocation8 + $0x20] sm:$0xff]
    %v188 = vld [vmem:[#allocation8 + $0x28] sm:$0xff]
    %v189 = vld [vmem:[#allocation8 + $0x30] sm:$0xff]
    %v190 = vld [vmem:[#allocation8 + $0x38] sm:$0xff]
    %v191 = vld [vmem:[#allocation8 + $0x40] sm:$0xff]
    %v192 = vld [vmem:[#allocation8 + $0x48] sm:$0xff]
    %v193 = vld [vmem:[#allocation8 + $0x50] sm:$0xff]
    %v194 = vld [vmem:[#allocation8 + $0x58] sm:$0xff]
    %v195 = vld [vmem:[#allocation8 + $0x60] sm:$0xff]
    %v196 = vld [vmem:[#allocation8 + $0x68] sm:$0xff]
    %v197 = vld [vmem:[#allocation8 + $0x70] sm:$0xff]
    %v198 = vld [vmem:[#allocation8 + $0x78] sm:$0xff]
    %v199 = vld [vmem:[%s4] sm:$0x1]
    %v201 = vlaneseq
    %v202 = vshrl.u32 %v201, 7
    %v203 = vsub.s32 0, %v202
    %v204 = vrot.slane %v199, %v203
    %206 = vmatprep.subr.mxu0 0.0
    %207 = vmatpush1.msra.mxu0 %v198
    %208 = vmatprep.subr.mxu0 0.0
    %209 = vmatpush1.msra.mxu0 %v197
    %210 = vmatprep.subr.mxu0 0.0
    %211 = vmatpush1.msra.mxu0 %v196
    %212 = vmatprep.subr.mxu0 0.0
    %213 = vmatpush1.msra.mxu0 %v195
    %214 = vmatprep.subr.mxu0 0.0
    %215 = vmatpush1.msra.mxu0 %v194
    %216 = vmatprep.subr.mxu0 0.0
    %217 = vmatpush1.msra.mxu0 %v193
    %218 = vmatprep.subr.mxu0 0.0
    %219 = vmatpush1.msra.mxu0 %v192
    %220 = vmatprep.subr.mxu0 0.0
    %221 = vmatpush1.msra.mxu0 %v191
    %222 = vmatprep.subr.mxu0 0.0
    %223 = vmatpush1.msra.mxu0 %v190
    %224 = vmatprep.subr.mxu0 0.0
    %225 = vmatpush1.msra.mxu0 %v189
    %226 = vmatprep.subr.mxu0 0.0
    %227 = vmatpush1.msra.mxu0 %v188
    %228 = vmatprep.subr.mxu0 0.0
    %229 = vmatpush1.msra.mxu0 %v187
    %230 = vmatprep.subr.mxu0 0.0
    %231 = vmatpush1.msra.mxu0 %v186
    %232 = vmatprep.subr.mxu0 0.0
    %233 = vmatpush1.msra.mxu0 %v185
    %234 = vmatprep.subr.mxu0 0.0
    %235 = vmatpush1.msra.mxu0 %v184
    %236 = vmatprep.subr.mxu0 0.0
    %237 = vmatpush1.msra.mxu0 %v183
    %238 = vmatprep.subr.mxu0 0.0
    %239 = vmatpush2.msra.mxu0 0.0
    %240 = vmatprep.subr.mxu0 0.0
    %241 = vmatpush2.msra.mxu0 0.0
    %242 = vmatprep.subr.mxu0 0.0
    %243 = vmatpush2.msra.mxu0 0.0
    %244 = vmatprep.subr.mxu0 0.0
    %245 = vmatpush2.msra.mxu0 0.0
    %246 = vmatprep.subr.mxu0 0.0
    %247 = vmatpush2.msra.mxu0 0.0
    %248 = vmatprep.subr.mxu0 0.0
    %249 = vmatpush2.msra.mxu0 0.0
    %250 = vmatprep.subr.mxu0 0.0
    %251 = vmatpush2.msra.mxu0 0.0
    %252 = vmatprep.subr.mxu0 0.0
    %253 = vmatpush2.msra.mxu0 0.0
    %254 = vmatprep.subr.mxu0 0.0
    %255 = vmatpush2.msra.mxu0 0.0
    %256 = vmatprep.subr.mxu0 0.0
    %257 = vmatpush2.msra.mxu0 0.0
    %258 = vmatprep.subr.mxu0 0.0
    %259 = vmatpush2.msra.mxu0 0.0
    %260 = vmatprep.subr.mxu0 0.0
    %261 = vmatpush2.msra.mxu0 0.0
    %262 = vmatprep.subr.mxu0 0.0
    %263 = vmatpush2.msra.mxu0 0.0
    %264 = vmatprep.subr.mxu0 0.0
    %265 = vmatpush2.msra.mxu0 0.0
    %266 = vmatprep.subr.mxu0 0.0
    %267 = vmatpush2.msra.mxu0 0.0
    %268 = vmatprep.subr.mxu0 0.0
    %269 = vmatpush2.msra.mxu0 0.0
    %270 = vmatprep.mubr.f32.mxu0 0.0
    %271 = vmatmul.mubr.f32.gmra.mxu0 %v182
    %v272 = vpop.f32.mrf.mxu0
    %v273 = vadd.f32 %v204, %v272
    %v274 = vpop.f32.mrf.mxu0
    %275 = vdwg.mxu0
    %vm276 = vcmp.gt.f32.partialorder %v273, 0.0
    %v277 = vmul.f32 %v180, %v273
    %v278 = vsel %vm276, %v273, %v277
    %v279 = vld [vmem:[#allocation9] sm:$0xff]
    %v280 = vld [vmem:[#allocation9 + $0x8] sm:$0xff]
    %v281 = vld [vmem:[#allocation9 + $0x10] sm:$0xff]
    %v282 = vld [vmem:[#allocation9 + $0x18] sm:$0xff]
    %v283 = vld [vmem:[#allocation9 + $0x20] sm:$0xff]
    %v284 = vld [vmem:[#allocation9 + $0x28] sm:$0xff]
    %v285 = vld [vmem:[#allocation9 + $0x30] sm:$0xff]
    %v286 = vld [vmem:[#allocation9 + $0x38] sm:$0xff]
    %v287 = vld [vmem:[#allocation9 + $0x40] sm:$0xff]
    %v288 = vld [vmem:[#allocation9 + $0x48] sm:$0xff]
    %v289 = vld [vmem:[#allocation9 + $0x50] sm:$0xff]
    %v290 = vld [vmem:[#allocation9 + $0x58] sm:$0xff]
    %v291 = vld [vmem:[#allocation9 + $0x60] sm:$0xff]
    %v292 = vld [vmem:[#allocation9 + $0x68] sm:$0xff]
    %v293 = vld [vmem:[#allocation9 + $0x70] sm:$0xff]
    %v294 = vld [vmem:[#allocation9 + $0x78] sm:$0xff]
    %v295 = vld [vmem:[%s6] sm:$0x1]
    %v297 = vlaneseq
    %v298 = vshrl.u32 %v297, 7
    %v299 = vsub.s32 0, %v298
    %v300 = vrot.slane %v295, %v299
    %302 = vmatprep.subr.mxu0 0.0
    %303 = vmatpush1.msra.mxu0 %v294
    %304 = vmatprep.subr.mxu0 0.0
    %305 = vmatpush1.msra.mxu0 %v293
    %306 = vmatprep.subr.mxu0 0.0
    %307 = vmatpush1.msra.mxu0 %v292
    %308 = vmatprep.subr.mxu0 0.0
    %309 = vmatpush1.msra.mxu0 %v291
    %310 = vmatprep.subr.mxu0 0.0
    %311 = vmatpush1.msra.mxu0 %v290
    %312 = vmatprep.subr.mxu0 0.0
    %313 = vmatpush1.msra.mxu0 %v289
    %314 = vmatprep.subr.mxu0 0.0
    %315 = vmatpush1.msra.mxu0 %v288
    %316 = vmatprep.subr.mxu0 0.0
    %317 = vmatpush1.msra.mxu0 %v287
    %318 = vmatprep.subr.mxu0 0.0
    %319 = vmatpush1.msra.mxu0 %v286
    %320 = vmatprep.subr.mxu0 0.0
    %321 = vmatpush1.msra.mxu0 %v285
    %322 = vmatprep.subr.mxu0 0.0
    %323 = vmatpush1.msra.mxu0 %v284
    %324 = vmatprep.subr.mxu0 0.0
    %325 = vmatpush1.msra.mxu0 %v283
    %326 = vmatprep.subr.mxu0 0.0
    %327 = vmatpush1.msra.mxu0 %v282
    %328 = vmatprep.subr.mxu0 0.0
    %329 = vmatpush1.msra.mxu0 %v281
    %330 = vmatprep.subr.mxu0 0.0
    %331 = vmatpush1.msra.mxu0 %v280
    %332 = vmatprep.subr.mxu0 0.0
    %333 = vmatpush1.msra.mxu0 %v279
    %334 = vmatprep.subr.mxu0 0.0
    %335 = vmatpush2.msra.mxu0 0.0
    %336 = vmatprep.subr.mxu0 0.0
    %337 = vmatpush2.msra.mxu0 0.0
    %338 = vmatprep.subr.mxu0 0.0
    %339 = vmatpush2.msra.mxu0 0.0
    %340 = vmatprep.subr.mxu0 0.0
    %341 = vmatpush2.msra.mxu0 0.0
    %342 = vmatprep.subr.mxu0 0.0
    %343 = vmatpush2.msra.mxu0 0.0
    %344 = vmatprep.subr.mxu0 0.0
    %345 = vmatpush2.msra.mxu0 0.0
    %346 = vmatprep.subr.mxu0 0.0
    %347 = vmatpush2.msra.mxu0 0.0
    %348 = vmatprep.subr.mxu0 0.0
    %349 = vmatpush2.msra.mxu0 0.0
    %350 = vmatprep.subr.mxu0 0.0
    %351 = vmatpush2.msra.mxu0 0.0
    %352 = vmatprep.subr.mxu0 0.0
    %353 = vmatpush2.msra.mxu0 0.0
    %354 = vmatprep.subr.mxu0 0.0
    %355 = vmatpush2.msra.mxu0 0.0
    %356 = vmatprep.subr.mxu0 0.0
    %357 = vmatpush2.msra.mxu0 0.0
    %358 = vmatprep.subr.mxu0 0.0
    %359 = vmatpush2.msra.mxu0 0.0
    %360 = vmatprep.subr.mxu0 0.0
    %361 = vmatpush2.msra.mxu0 0.0
    %362 = vmatprep.subr.mxu0 0.0
    %363 = vmatpush2.msra.mxu0 0.0
    %364 = vmatprep.subr.mxu0 0.0
    %365 = vmatpush2.msra.mxu0 0.0
    %366 = vmatprep.mubr.f32.mxu0 0.0
    %367 = vmatmul.mubr.f32.gmra.mxu0 %v278
    %v368 = vpop.f32.mrf.mxu0
    %v369 = vadd.f32 %v300, %v368
    %v370 = vpop.f32.mrf.mxu0
    %371 = vdwg.mxu0
    %372 = vst [vmem:[#allocation11] sm:$0xff] %v369
    // Predicated region
    $region50: #{tpu_custom_call.1} parent=1 // pred_check
      _
    $region51: #{tpu_custom_call.1} parent=1 // pred_check_branch
      %374 = sbr.rel (0) target = $region53
    $region52: #{tpu_custom_call.1} parent=1 // pred_region
      %s376 = ssub.s32 128, 128
      %377 = vsyncadd [#allocation5], %s376
      %s379 = sshll.u32 [#allocation11], 4
      %s380 = int_to_ptr.vmem [resolvable:$true] %s379
      %382 = dma.vmem_to_hbm [thread:$0]  %s380, 128, %s8, [#allocation5]
    $region53: #{tpu_custom_call.1} parent=1 // pred_fallthru
      _
    // Predicated region
    $region54: #{tpu_custom_call.1} parent=1 // pred_check
      _
    $region55: #{tpu_custom_call.1} parent=1 // pred_check_branch
      %384 = sbr.rel (0) target = $region57
    $region56: #{tpu_custom_call.1} parent=1 // pred_region
      %385 = dma.done [#allocation5], 128
    $region57: #{tpu_custom_call.1} parent=1 // pred_fallthru
      _
    %386 = vsyncpa [#allocation4], 1
    %387 = vsyncpa [#allocation7], 1
    %388 = vsyncpa [#allocation10], 1
    %389 = vsyncpa [#allocation5], 1

</llo_original>
